<compile_context>
chip_gen: v6e
topology: v6e:2x2x1
jax: 0.10.0
libtpu: 0.0.40
codegen_flags: <defaults>
</compile_context>

<pallas_src>
import jax
import jax.numpy as jnp
from jax.experimental import pallas as pl
from jax.experimental.pallas import tpu as pltpu


_LANE_CANDIDATES = (2048, 1024, 512, 256, 128)
_TILE_TARGET_BYTES = 8 * 1024 * 1024   # ~8 MiB per buffer (in+out x 2-deep = 32 MiB resident)
_MIN_SPLIT_BYTES = 1 * 1024 * 1024     # force >=2 grid steps above this (v7x dual-TC balance)
_VMEM_LIMIT_BYTES = 48 * 1024 * 1024   # raise scoped-VMEM limit (v5e default is only 16 MiB)


def _sigmoid_kernel(x_ref, o_ref):
    # f32 path: exact sigmoid lowering; EUP has slack for f32 on every generation.
    o_ref[...] = jax.nn.sigmoid(x_ref[...])


def _sigmoid_kernel_tanh(x_ref, o_ref):
    # 16-bit path: sigmoid(x) = 0.5*tanh(0.5*x) + 0.5 -> a single EUP
    # transcendental per element (keeps bf16 on v7x memory-bound, not EUP-bound).
    x = x_ref[...]
    half = jnp.asarray(0.5, dtype=x.dtype)
    o_ref[...] = half * jnp.tanh(half * x) + half


def _round_up(v: int, m: int) -> int:
    return -(-v // m) * m


def _sigmoid_2d(x2d: jnp.ndarray, tile_target_bytes: int) -> jnp.ndarray:
    """Runs the sigmoid kernel over a lane-dense (rows, lane) slab."""
    rows, lane = x2d.shape
    dtype = x2d.dtype
    itemsize = jnp.dtype(dtype).itemsize
    n_elems = rows * lane
    total_bytes = n_elems * itemsize

    # Sub-32-bit dtypes pack along sublanes: tile rows multiple of 8/16/32.
    sublane_mult = 8 * max(1, 4 // itemsize)

    tile_rows = (tile_target_bytes // (lane * itemsize)) // sublane_mult * sublane_mult
    tile_rows = max(sublane_mult, tile_rows)

    # Keep both v7x TensorCores busy: for slabs above ~1 MiB guarantee >=2
    # balanced grid steps instead of one giant block.
    if total_bytes > _MIN_SPLIT_BYTES and rows > sublane_mult:
        half_rows = _round_up(-(-rows // 2), sublane_mult)
        tile_rows = min(tile_rows, half_rows)

    if tile_rows >= rows:
        tile_rows = rows  # single block covering the full (tiny) row extent
    steps = -(-rows // tile_rows)

    # Prefer an even step count for small grids so the two v7x TCs split evenly.
    if 3 <= steps <= 9 and steps % 2 == 1:
        cand = _round_up(-(-rows // (steps + 1)), sublane_mult)
        if cand >= sublane_mult:
            cand_steps = -(-rows // cand)
            if cand_steps % 2 == 0:
                tile_rows, steps = cand, cand_steps

    kernel = _sigmoid_kernel_tanh if itemsize < 4 else _sigmoid_kernel

    return pl.pallas_call(
        kernel,
        out_shape=jax.ShapeDtypeStruct((rows, lane), dtype),
        grid_spec=pltpu.PrefetchScalarGridSpec(
            num_scalar_prefetch=0,
            grid=(steps,),  # ragged last row-block handled by Pallas
            in_specs=[pl.BlockSpec((tile_rows, lane), lambda i: (i, 0))],
            out_specs=pl.BlockSpec((tile_rows, lane), lambda i: (i, 0)),
        ),
        compiler_params=pltpu.CompilerParams(
            dimension_semantics=("parallel",),
            vmem_limit_bytes=_VMEM_LIMIT_BYTES,
        ),
        cost_estimate=pl.CostEstimate(
            flops=4 * n_elems,
            transcendentals=n_elems,
            bytes_accessed=2 * n_elems * itemsize,
        ),
    )(x2d)


def sigmoid_pallas(x: jnp.ndarray, *, tile_target_bytes: int = _TILE_TARGET_BYTES) -> jnp.ndarray:
    """Applies sigmoid elementwise via a Pallas TPU kernel. Preserves shape/dtype."""
    orig_shape = x.shape
    flat = x.reshape(-1)
    n = flat.shape[0]
    if n == 0:
        return x

    # Widest lane-dense last dim (multiple of 128) dividing n -> no pad/slice.
    lane = next((w for w in _LANE_CANDIDATES if n % w == 0), None)
    if lane is not None:
        out2d = _sigmoid_2d(flat.reshape(n // lane, lane), tile_target_bytes)
        return out2d.reshape(orig_shape)

    # Rare path: n not a multiple of 128.  Run the kernel on the 128-aligned
    # prefix and compute the <128-element tail with plain sigmoid (keeps HBM
    # traffic at ~2n instead of the ~6n a whole-array pad + slice would cost).
    lane = 128
    aligned = (n // lane) * lane
    pieces = []
    if aligned:
        head = _sigmoid_2d(flat[:aligned].reshape(aligned // lane, lane), tile_target_bytes)
        pieces.append(head.reshape(-1))
    tail = flat[aligned:]
    if tail.shape[0]:
        pieces.append(jax.nn.sigmoid(tail))
    out = pieces[0] if len(pieces) == 1 else jnp.concatenate(pieces)
    return out.reshape(orig_shape)


if __name__ == "__main__":
    key = jax.random.PRNGKey(0)

    # 1) Main case, consistent with a conv-style module: NCHW (2, 4, 16, 16) f32.
    x = jax.random.normal(key, (2, 4, 16, 16), dtype=jnp.float32)
    out = sigmoid_pallas(x)
    jax.block_until_ready(out)
    ref = jax.nn.sigmoid(x)
    assert out.shape == x.shape and out.dtype == x.dtype
    assert jnp.allclose(out, ref, atol=1e-6, rtol=1e-6)

    # 2) Multi-tile + ragged last row-block path (small tile target to exercise
    #    the pipeline without a huge input): 25600 elems -> (25, 1024) slab.
    k2 = jax.random.PRNGKey(1)
    x2 = jax.random.normal(k2, (25600,), dtype=jnp.float32)
    out2 = sigmoid_pallas(x2, tile_target_bytes=64 * 1024)
    jax.block_until_ready(out2)
    assert jnp.allclose(out2, jax.nn.sigmoid(x2), atol=1e-6, rtol=1e-6)

    # 3) Element count not a multiple of 128 (prefix + tail path).
    k3 = jax.random.PRNGKey(2)
    x3 = jax.random.normal(k3, (7, 11, 5), dtype=jnp.float32)  # 385 elements
    out3 = sigmoid_pallas(x3)
    jax.block_until_ready(out3)
    assert out3.shape == x3.shape
    assert jnp.allclose(out3, jax.nn.sigmoid(x3), atol=1e-6, rtol=1e-6)

    # 4) bf16 path (sublane-packed tiles, single-EUP tanh formulation).
    x4 = jax.random.normal(key, (2, 4, 16, 16), dtype=jnp.bfloat16)
    out4 = sigmoid_pallas(x4)
    jax.block_until_ready(out4)
    ref4 = jax.nn.sigmoid(x4.astype(jnp.float32))
    assert out4.dtype == jnp.bfloat16
    assert jnp.allclose(out4.astype(jnp.float32), ref4, atol=1e-2, rtol=1e-2)

    print("KERNEL_OK")
</pallas_src>

<mosaic_0001>
module attributes {stable_mosaic.version = 11 : i64} {
  func.func @_sigmoid_kernel(%arg0: i32, %arg1: memref<1x2048xf32, #tpu.memory_space<vmem>>, %arg2: memref<1x2048xf32, #tpu.memory_space<vmem>>) attributes {dimension_semantics = [#tpu.dimension_semantics<parallel>], iteration_bounds = array<i64: 1>, scalar_prefetch = 0 : i64, scratch_operands = 0 : i64, tpu.core_type = #tpu.core_type<tc>, window_params = [{transform_indices = @transform_0, window_bounds = array<i64: 1, 2048>}, {transform_indices = @transform_1, window_bounds = array<i64: 1, 2048>}]} {
    %c0 = arith.constant 0 : index
    %c0_0 = arith.constant 0 : index
    %0 = vector.load %arg1[%c0, %c0_0] : memref<1x2048xf32, #tpu.memory_space<vmem>>, vector<1x2048xf32>
    %1 = arith.negf %0 : vector<1x2048xf32>
    %2 = math.exp %1 : vector<1x2048xf32>
    %cst = arith.constant 1.000000e+00 : f32
    %3 = vector.broadcast %cst : f32 to vector<1x2048xf32>
    %4 = arith.addf %3, %2 : vector<1x2048xf32>
    %5 = arith.divf %3, %4 : vector<1x2048xf32>
    %c0_1 = arith.constant 0 : index
    %c0_2 = arith.constant 0 : index
    %6 = vector.load %arg2[%c0_1, %c0_2] : memref<1x2048xf32, #tpu.memory_space<vmem>>, vector<1x2048xf32>
    tpu.vector_store %arg2[%c0_1, %c0_2], %5 {strides = array<i32>} : memref<1x2048xf32, #tpu.memory_space<vmem>>, vector<1x2048xf32>,
    return
  }
  func.func @transform_0(%arg0: i32) -> (i32, i32) {
    %c0_i32 = arith.constant 0 : i32
    %c0_i32_0 = arith.constant 0 : i32
    return %arg0, %c0_i32 : i32, i32
  }
  func.func @transform_1(%arg0: i32) -> (i32, i32) {
    %c0_i32 = arith.constant 0 : i32
    %c0_i32_0 = arith.constant 0 : i32
    return %arg0, %c0_i32 : i32, i32
  }
}

</mosaic_0001>

<llo_original>
// kernel: tpu_custom_call.1
$region0: #{tpu_custom_call.1}
  #allocation0 [shape = 'u32[]', space=smem, size = 0x4, offset = 0x4, fixed_abs, tag = 'smem constant byte address 0x4 - core index']
  #allocation1 [shape = 'u32[144,128]{1,0:T(1,128)}', space=vmem, size = 0x12000, scoped, tag = 'internal scratch']
  %s0 = inlined_call_operand.hbm [shape: f32[1,2048], index: 0, kind: input, shape index: {}]
  %s1 = inlined_call_operand.hbm [shape: f32[1,2048], index: 1, kind: output, shape index: {}]
  %s2 = sld [smem:[#allocation0]]
  $region18: #{tpu_custom_call.1} parent=0
    _
  %s4 = ssub.s32 1, %s2
  %s5 = scalar_select 0, %s4, %s2
  $region1: #{tpu_custom_call.1} parent=0
    #allocation2 [shape = 'u8[8192]{0}', space=vmem, size = 0x2000, scoped, tag = 'input window, operand 0, single buffered']
    #allocation3 [shape = 's32[1]{0}', space=sflag, size = 0x4, scoped, tag = 'scoped memory for tpu_custom_call.1']
    #allocation4 [shape = 's32[1]{0}', space=sflag, size = 0x4, scoped, tag = 'scoped memory for tpu_custom_call.1']
    #allocation5 [shape = 'u8[8192]{0}', space=vmem, size = 0x2000, scoped, tag = 'output window, operand 0, single buffered']
    %6 = vsyncpa [#allocation3], 0
    %7 = vsyncpa [#allocation4], 0
    // Predicated region
    $region2: #{tpu_custom_call.1} parent=1 // pred_check
      _
    $region3: #{tpu_custom_call.1} parent=1 // pred_check_branch
      %9 = sbr.rel (0) target = $region5
    $region4: #{tpu_custom_call.1} parent=1 // pred_region
      %s11 = ssub.s32 256, 256
      %12 = vsyncadd [#allocation3], %s11
      %s14 = sshll.u32 [#allocation2], 4
      %s15 = int_to_ptr.vmem [resolvable:$true] %s14
      %17 = dma.hbm_to_vmem [thread:$0]  %s0, 256, %s15, [#allocation3]
    $region5: #{tpu_custom_call.1} parent=1 // pred_fallthru
      _
    // Predicated region
    $region6: #{tpu_custom_call.1} parent=1 // pred_check
      _
    $region7: #{tpu_custom_call.1} parent=1 // pred_check_branch
      %19 = sbr.rel (0) target = $region9
    $region8: #{tpu_custom_call.1} parent=1 // pred_region
      %20 = dma.done [#allocation3], 256
    $region9: #{tpu_custom_call.1} parent=1 // pred_fallthru
      _
    %v21 = vld [vmem:[#allocation2] sm:$0xff]
    %v22 = vld [vmem:[#allocation2 + $0x8] sm:$0xff]
    %v23 = vxor.u32 %v21, 2147483648
    %v24 = vxor.u32 %v22, 2147483648
    %v25 = vmul.f32 %v23, 1.442695
    %v26 = vpow.pop %v25
    %v27 = vmul.f32 %v24, 1.442695
    %v28 = vpow.pop %v27
    %v29 = vadd.f32 %v26, 1.0
    %v30 = vadd.f32 %v28, 1.0
    %v31 = vrcp.pop %v29
    %v32 = vmul.f32 1.0, %v31
    %v33 = vrcp.pop %v30
    %v34 = vmul.f32 1.0, %v33
    %35 = vst [vmem:[#allocation5] sm:$0xff] %v32
    %36 = vst [vmem:[#allocation5 + $0x8] sm:$0xff] %v34
    // Predicated region
    $region10: #{tpu_custom_call.1} parent=1 // pred_check
      _
    $region11: #{tpu_custom_call.1} parent=1 // pred_check_branch
      %38 = sbr.rel (0) target = $region13
    $region12: #{tpu_custom_call.1} parent=1 // pred_region
      %s40 = ssub.s32 256, 256
      %41 = vsyncadd [#allocation4], %s40
      %s43 = sshll.u32 [#allocation5], 4
      %s44 = int_to_ptr.vmem [resolvable:$true] %s43
      %46 = dma.vmem_to_hbm [thread:$0]  %s44, 256, %s1, [#allocation4]
    $region13: #{tpu_custom_call.1} parent=1 // pred_fallthru
      _
    // Predicated region
    $region14: #{tpu_custom_call.1} parent=1 // pred_check
      _
    $region15: #{tpu_custom_call.1} parent=1 // pred_check_branch
      %48 = sbr.rel (0) target = $region17
    $region16: #{tpu_custom_call.1} parent=1 // pred_region
      %49 = dma.done [#allocation4], 256
    $region17: #{tpu_custom_call.1} parent=1 // pred_fallthru
      _
    %50 = vsyncpa [#allocation3], 1
    %51 = vsyncpa [#allocation4], 1

</llo_original>
